<compile_context>
chip_gen: v7x
topology: tpu7x:2x2x1
jax: 0.10.0
libtpu: 0.0.40
codegen_flags: <defaults>
</compile_context>

<pallas_src>
import functools

import jax
import jax.numpy as jnp
from jax.experimental import pallas as pl
from jax.experimental.pallas import tpu as pltpu


def _combine_kernel(x1_ref, x2_ref, w1_ref, w2_ref, b_ref, o_ref, *,
                    compute_dtype, precision):
    # x1_ref/x2_ref: (1, C, TS) f32    w1_ref/w2_ref: (TO, C) compute_dtype
    # b_ref: (TO, 1) f32               o_ref: (1, TO, TS) out dtype
    x1 = jnp.maximum(x1_ref[0], 0.0)          # fused ReLU (relu(0)=0 -> pad order safe)
    x2 = x2_ref[0]
    if compute_dtype != x1_ref.dtype:
        # In-VMEM cast: keeps the bf16 MXU benefit without paying a separate
        # XLA convert pass (extra HBM read+write) outside the kernel.
        x1 = x1.astype(compute_dtype)
        x2 = x2.astype(compute_dtype)
    acc = jnp.dot(w1_ref[...], x1, preferred_element_type=jnp.float32,
                  precision=precision)
    acc = acc + jnp.dot(w2_ref[...], x2, preferred_element_type=jnp.float32,
                        precision=precision)
    acc = acc + b_ref[...]                    # (TO, 1) broadcast over lanes
    o_ref[0] = acc.astype(o_ref.dtype)


def _round_up(x, m):
    return ((x + m - 1) // m) * m


def _vmem_capacity_bytes():
    try:
        cap = getattr(pltpu.get_tpu_info(), "vmem_capacity_bytes", None)
        if cap:
            return int(cap)
    except Exception:
        pass
    return 64 * 1024 * 1024  # conservative default: v7x physical VMEM per TC


def combine_pallas(x1_bcs, x2_bcs, w1, w2, bias, *, compute_dtype=jnp.bfloat16,
                   out_dtype=None):
    """x1_bcs/x2_bcs: (B, C, S); w1/w2: (out_ch, C); bias: (out_ch,) -> (B, out_ch, S)."""
    B, C, S = x1_bcs.shape
    out_ch = w1.shape[0]
    out_dtype = x1_bcs.dtype if out_dtype is None else out_dtype
    compute_dtype = jnp.dtype(compute_dtype)

    in_itm = jnp.dtype(x1_bcs.dtype).itemsize
    cmp_itm = compute_dtype.itemsize
    out_itm = jnp.dtype(out_dtype).itemsize

    # --- generation-aware VMEM budget (v5e/v6e 128 MiB, v7x 64 MiB per TC).
    vmem_cap = _vmem_capacity_bytes()
    budget = int(vmem_cap * 0.65)
    tile_s_target = 2048 if vmem_cap >= 96 * 1024 * 1024 else 1024

    def vmem_bytes(ts, to):
        inputs = 2 * 2 * C * ts * in_itm             # x1, x2 blocks, double-buffered
        in_tmp = 2 * C * ts * max(cmp_itm, 4)        # in-kernel relu / cast temporaries
        outputs = 2 * to * ts * out_itm              # output block, double-buffered
        weights = 2 * 2 * to * C * cmp_itm           # w1, w2 (+ double buffer)
        acc_tmp = 3 * to * ts * 4                    # Mosaic f32 dot/add/cast temporaries
        bias_b = 2 * _round_up(to, 8) * 128 * 4      # padded bias block
        return inputs + in_tmp + outputs + weights + acc_tmp + bias_b

    # --- spatial (lane) tile: multiple of 128, as large as useful, VMEM-bounded.
    tile_s = min(_round_up(tile_s_target, 128), _round_up(S, 128))
    tile_o = out_ch                                  # prefer full out_ch (no input re-reads)
    while vmem_bytes(tile_s, tile_o) > budget and tile_s > 512:
        tile_s = max(512, (tile_s // 2 // 128) * 128)
    while vmem_bytes(tile_s, tile_o) > budget and tile_o % 16 == 0 and tile_o > 8:
        tile_o //= 2
    while vmem_bytes(tile_s, tile_o) > budget and tile_s > 128:
        tile_s = max(128, (tile_s // 2 // 128) * 128)
    # TODO(synk): if weights alone exceed the budget (huge C), add a K-tiling grid axis.

    # v7x has 2 TensorCores: keep >= 2 steps along a parallel axis when possible.
    if B == 1 and pl.cdiv(S, tile_s) == 1 and tile_s >= 256:
        tile_s = _round_up(max(128, tile_s // 2), 128)

    n_s = pl.cdiv(S, tile_s)                          # ragged tail handled by Pallas OOB
    n_j = out_ch // tile_o
    grid = (B, n_s, n_j)                              # j innermost: x1/x2 stay VMEM-resident

    w1_c = w1.astype(compute_dtype)                   # weights are tiny; boundary cast is fine
    w2_c = w2.astype(compute_dtype)
    bias2d = bias.reshape(out_ch, 1).astype(jnp.float32)

    # Honest cost estimate: inputs read once (j innermost), weights refetched per (b,s)
    # step only when out_ch is split, output at its true dtype.
    weight_reads = 1 if n_j == 1 else B * n_s
    cost = pl.CostEstimate(
        flops=int(2 * B * S * (2 * C) * out_ch),
        transcendentals=0,
        bytes_accessed=int(2 * B * C * S * in_itm
                           + B * out_ch * S * out_itm
                           + 2 * out_ch * C * cmp_itm * weight_reads
                           + out_ch * 4),
    )

    est = vmem_bytes(tile_s, tile_o)
    vmem_limit = int(min(vmem_cap - 2 * 1024 * 1024,
                         max(32 * 1024 * 1024, int(1.3 * est))))

    kernel = functools.partial(
        _combine_kernel,
        compute_dtype=compute_dtype,
        precision=(jax.lax.Precision.HIGHEST
                   if compute_dtype == jnp.float32 else jax.lax.Precision.DEFAULT),
    )

    out = pl.pallas_call(
        kernel,
        out_shape=jax.ShapeDtypeStruct((B, out_ch, S), out_dtype),
        grid_spec=pltpu.PrefetchScalarGridSpec(
            num_scalar_prefetch=0,
            grid=grid,
            in_specs=[
                pl.BlockSpec((1, C, tile_s), lambda b, s, j: (b, 0, s)),   # x1 (pre-ReLU, f32)
                pl.BlockSpec((1, C, tile_s), lambda b, s, j: (b, 0, s)),   # x2 (f32)
                pl.BlockSpec((tile_o, C), lambda b, s, j: (j, 0)),         # W1
                pl.BlockSpec((tile_o, C), lambda b, s, j: (j, 0)),         # W2
                pl.BlockSpec((tile_o, 1), lambda b, s, j: (j, 0)),         # bias
            ],
            out_specs=pl.BlockSpec((1, tile_o, tile_s), lambda b, s, j: (b, j, s)),
        ),
        compiler_params=pltpu.CompilerParams(
            dimension_semantics=("parallel", "parallel", "arbitrary"),
            vmem_limit_bytes=vmem_limit,
        ),
        cost_estimate=cost,
    )(x1_bcs, x2_bcs, w1_c, w2_c, bias2d)

    return out


def combine_forward(x1_nchw, x2_nchw, weight, bias, *, compute_dtype=jnp.bfloat16,
                    out_dtype=None):
    """Full Combine.forward.  x1/x2: NCHW f32.  weight: (out_ch, 2*in_ch, 1, 1)."""
    # --- glue: zero-pad x1 to x2 spatial size (matches F.pad with int(diff/2) per side).
    diff_h = x2_nchw.shape[2] - x1_nchw.shape[2]
    diff_w = x2_nchw.shape[3] - x1_nchw.shape[3]
    ph, pw = int(diff_h / 2), int(diff_w / 2)
    if (x1_nchw.shape[2] + 2 * ph != x2_nchw.shape[2]
            or x1_nchw.shape[3] + 2 * pw != x2_nchw.shape[3]):
        raise ValueError("odd spatial difference: int(diff/2)-per-side padding cannot "
                         "match x2's size (same limitation as the PyTorch module).")
    if ph < 0 or pw < 0:
        # TODO(synk): negative padding (cropping) path not implemented.
        raise ValueError("x1 larger than x2 (negative pad) is not supported.")
    if ph or pw:
        x1_nchw = jnp.pad(x1_nchw, ((0, 0), (0, 0), (ph, ph), (pw, pw)))

    B, C, H, W = x1_nchw.shape
    out_ch = weight.shape[0]

    # --- contiguous reshape only (no transpose): (B, C, H, W) -> (B, C, H*W)
    x1_bcs = x1_nchw.reshape(B, C, H * W)
    x2_bcs = x2_nchw.reshape(B, C, H * W)

    # 1x1 conv weight (out_ch, 2C, 1, 1) -> split halves; concat folded into W1/W2.
    w = weight[:, :, 0, 0]          # (out_ch, 2C)
    w1 = w[:, :C]                   # applied to relu(x1)
    w2 = w[:, C:]                   # applied to x2

    out_bcs = combine_pallas(x1_bcs, x2_bcs, w1, w2, bias,
                             compute_dtype=compute_dtype, out_dtype=out_dtype)
    return out_bcs.reshape(B, out_ch, H, W)


def _reference_forward(x1_nchw, x2_nchw, weight, bias):
    """Pure-JAX f32 reference mirroring the PyTorch module."""
    diff_h = x2_nchw.shape[2] - x1_nchw.shape[2]
    diff_w = x2_nchw.shape[3] - x1_nchw.shape[3]
    ph, pw = int(diff_h / 2), int(diff_w / 2)
    x1 = jnp.maximum(x1_nchw, 0.0)
    x1 = jnp.pad(x1, ((0, 0), (0, 0), (ph, ph), (pw, pw)))
    x = jnp.concatenate([x1, x2_nchw], axis=1)           # (B, 2C, H, W)
    w = weight[:, :, 0, 0]                               # (out_ch, 2C)
    y = jnp.einsum("bchw,oc->bohw", x, w,
                   precision=jax.lax.Precision.HIGHEST) + bias[None, :, None, None]
    return y


if __name__ == "__main__":
    # Small shapes: batch=2, in_ch=out_ch=4, spatial=16x16.
    B, C, H, W = 2, 4, 16, 16
    out_ch = 4

    key = jax.random.PRNGKey(0)
    k1, k2, kw, kb = jax.random.split(key, 4)
    x1 = jax.random.normal(k1, (B, C, H, W), dtype=jnp.float32)
    x2 = jax.random.normal(k2, (B, C, H, W), dtype=jnp.float32)
    weight = jax.random.normal(kw, (out_ch, 2 * C, 1, 1), dtype=jnp.float32) * 0.1
    bias = jax.random.normal(kb, (out_ch,), dtype=jnp.float32) * 0.1

    ref = _reference_forward(x1, x2, weight, bias)

    # f32 path (exactness check, precision=HIGHEST inside the kernel).
    out_f32 = jax.block_until_ready(
        combine_forward(x1, x2, weight, bias, compute_dtype=jnp.float32))
    assert out_f32.shape == (B, out_ch, H, W)
    assert out_f32.dtype == jnp.float32
    assert jnp.allclose(out_f32, ref, atol=1e-5, rtol=1e-5), "f32 mismatch vs reference"

    # bf16 compute path (default): f32 inputs read directly, cast in VMEM; f32 accumulate.
    out_bf16c = jax.block_until_ready(
        combine_forward(x1, x2, weight, bias, compute_dtype=jnp.bfloat16))
    assert out_bf16c.shape == (B, out_ch, H, W)
    assert jnp.allclose(out_bf16c, ref, atol=3e-2, rtol=3e-2), "bf16 mismatch vs reference"

    # bf16 output path (for a bf16 consumer): halves output write traffic.
    out_bf16o = jax.block_until_ready(
        combine_forward(x1, x2, weight, bias, compute_dtype=jnp.bfloat16,
                        out_dtype=jnp.bfloat16))
    assert out_bf16o.dtype == jnp.bfloat16
    assert jnp.allclose(out_bf16o.astype(jnp.float32), ref, atol=5e-2, rtol=5e-2), \
        "bf16-output mismatch vs reference"

    print("KERNEL_OK")
</pallas_src>

<mosaic_0001>
module attributes {stable_mosaic.version = 11 : i64} {
  func.func @_combine_kernel(%arg0: i32, %arg1: i32, %arg2: i32, %arg3: memref<1x4x256xf32, #tpu.memory_space<vmem>>, %arg4: memref<1x4x256xf32, #tpu.memory_space<vmem>>, %arg5: memref<4x4xf32, #tpu.memory_space<vmem>>, %arg6: memref<4x4xf32, #tpu.memory_space<vmem>>, %arg7: memref<4x1xf32, #tpu.memory_space<vmem>>, %arg8: memref<1x4x256xf32, #tpu.memory_space<vmem>>) attributes {dimension_semantics = [#tpu.dimension_semantics<parallel>, #tpu.dimension_semantics<parallel>, #tpu.dimension_semantics<arbitrary>], iteration_bounds = array<i64: 2, 1, 1>, scalar_prefetch = 0 : i64, scratch_operands = 0 : i64, tpu.core_type = #tpu.core_type<tc>, window_params = [{transform_indices = @transform_0, window_bounds = array<i64: 1, 4, 256>}, {transform_indices = @transform_1, window_bounds = array<i64: 1, 4, 256>}, {transform_indices = @transform_2, window_bounds = array<i64: 4, 4>}, {transform_indices = @transform_3, window_bounds = array<i64: 4, 4>}, {transform_indices = @transform_4, window_bounds = array<i64: 4, 1>}, {transform_indices = @transform_5, window_bounds = array<i64: 1, 4, 256>}]} {
    %c0 = arith.constant 0 : index
    %c0_0 = arith.constant 0 : index
    %c0_1 = arith.constant 0 : index
    %0 = vector.load %arg3[%c0, %c0_0, %c0_1] : memref<1x4x256xf32, #tpu.memory_space<vmem>>, vector<1x4x256xf32>
    %1 = vector.shape_cast %0 : vector<1x4x256xf32> to vector<4x256xf32>
    %cst = arith.constant 0.000000e+00 : f32
    %2 = vector.broadcast %cst : f32 to vector<4x256xf32>
    %3 = arith.maximumf %1, %2 : vector<4x256xf32>
    %c0_2 = arith.constant 0 : index
    %c0_3 = arith.constant 0 : index
    %c0_4 = arith.constant 0 : index
    %4 = vector.load %arg4[%c0_2, %c0_3, %c0_4] : memref<1x4x256xf32, #tpu.memory_space<vmem>>, vector<1x4x256xf32>
    %5 = vector.shape_cast %4 : vector<1x4x256xf32> to vector<4x256xf32>
    %c0_5 = arith.constant 0 : index
    %c0_6 = arith.constant 0 : index
    %6 = vector.load %arg5[%c0_5, %c0_6] : memref<4x4xf32, #tpu.memory_space<vmem>>, vector<4x4xf32>
    %cst_7 = arith.constant dense<0.000000e+00> : vector<4x256xf32>
    %7 = tpu.matmul %6, %3, %cst_7 {dimension_numbers = #tpu.dot_dimension_numbers<[1], [0], [0], [1], [0, 0, 1, 1], [], []>, precision = #tpu.contract_precision<fp32>} : vector<4x4xf32>, vector<4x256xf32>, vector<4x256xf32> -> vector<4x256xf32>
    %c0_8 = arith.constant 0 : index
    %c0_9 = arith.constant 0 : index
    %8 = vector.load %arg6[%c0_8, %c0_9] : memref<4x4xf32, #tpu.memory_space<vmem>>, vector<4x4xf32>
    %cst_10 = arith.constant dense<0.000000e+00> : vector<4x256xf32>
    %9 = tpu.matmul %8, %5, %cst_10 {dimension_numbers = #tpu.dot_dimension_numbers<[1], [0], [0], [1], [0, 0, 1, 1], [], []>, precision = #tpu.contract_precision<fp32>} : vector<4x4xf32>, vector<4x256xf32>, vector<4x256xf32> -> vector<4x256xf32>
    %10 = arith.addf %7, %9 : vector<4x256xf32>
    %c0_11 = arith.constant 0 : index
    %c0_12 = arith.constant 0 : index
    %11 = vector.load %arg7[%c0_11, %c0_12] : memref<4x1xf32, #tpu.memory_space<vmem>>, vector<4x1xf32>
    %12 = vector.broadcast %11 : vector<4x1xf32> to vector<4x256xf32>
    %13 = arith.addf %10, %12 : vector<4x256xf32>
    %c0_13 = arith.constant 0 : index
    %c0_14 = arith.constant 0 : index
    %c0_15 = arith.constant 0 : index
    %14 = vector.load %arg8[%c0_13, %c0_14, %c0_15] : memref<1x4x256xf32, #tpu.memory_space<vmem>>, vector<1x4x256xf32>
    %15 = vector.shape_cast %14 : vector<1x4x256xf32> to vector<4x256xf32>
    %16 = vector.shape_cast %13 : vector<4x256xf32> to vector<1x4x256xf32>
    tpu.vector_store %arg8[%c0_13, %c0_14, %c0_15], %16 {strides = array<i32>} : memref<1x4x256xf32, #tpu.memory_space<vmem>>, vector<1x4x256xf32>,
    return
  }
  func.func @transform_0(%arg0: i32, %arg1: i32, %arg2: i32) -> (i32, i32, i32) {
    %c0_i32 = arith.constant 0 : i32
    %c0_i32_0 = arith.constant 0 : i32
    return %arg0, %c0_i32, %arg1 : i32, i32, i32
  }
  func.func @transform_1(%arg0: i32, %arg1: i32, %arg2: i32) -> (i32, i32, i32) {
    %c0_i32 = arith.constant 0 : i32
    %c0_i32_0 = arith.constant 0 : i32
    return %arg0, %c0_i32, %arg1 : i32, i32, i32
  }
  func.func @transform_2(%arg0: i32, %arg1: i32, %arg2: i32) -> (i32, i32) {
    %c0_i32 = arith.constant 0 : i32
    %c0_i32_0 = arith.constant 0 : i32
    return %arg2, %c0_i32 : i32, i32
  }
  func.func @transform_3(%arg0: i32, %arg1: i32, %arg2: i32) -> (i32, i32) {
    %c0_i32 = arith.constant 0 : i32
    %c0_i32_0 = arith.constant 0 : i32
    return %arg2, %c0_i32 : i32, i32
  }
  func.func @transform_4(%arg0: i32, %arg1: i32, %arg2: i32) -> (i32, i32) {
    %c0_i32 = arith.constant 0 : i32
    %c0_i32_0 = arith.constant 0 : i32
    return %arg2, %c0_i32 : i32, i32
  }
  func.func @transform_5(%arg0: i32, %arg1: i32, %arg2: i32) -> (i32, i32, i32) {
    %c0_i32 = arith.constant 0 : i32
    return %arg0, %arg2, %arg1 : i32, i32, i32
  }
}

</mosaic_0001>

<llo_original>
// kernel: tpu_custom_call.1
$region0: #{tpu_custom_call.1}
  #allocation0 [shape = 'u32[]', space=smem, size = 0x4, offset = 0x4, fixed_abs, tag = 'smem constant byte address 0x4 - core index']
  #allocation1 [shape = 'u32[144,128]{1,0:T(1,128)}', space=vmem, size = 0x12000, scoped, tag = 'internal scratch']
  %s0 = inlined_call_operand.hbm [shape: f32[2,4,256], index: 0, kind: input, shape index: {}]
  %s1 = inlined_call_operand.hbm [shape: f32[2,4,256], index: 1, kind: input, shape index: {}]
  %s2 = inlined_call_operand.vmem [shape: f32[4,4], index: 2, kind: input, shape index: {}]
  %s3 = inlined_call_operand.vmem [shape: f32[4,4], index: 3, kind: input, shape index: {}]
  %s4 = inlined_call_operand.vmem [shape: f32[4,1], index: 4, kind: input, shape index: {}]
  %s5 = inlined_call_operand.hbm [shape: f32[2,4,256], index: 5, kind: output, shape index: {}]
  %s6 = sld [smem:[#allocation0]]
  $region61: #{tpu_custom_call.1} parent=0
    _
  %s8 = ssub.s32 1, %s6
  %s9 = scalar_select 0, %s8, %s6
  $region1: #{tpu_custom_call.1} parent=0
    #allocation2 [shape = 'u8[8192]{0}', space=vmem, size = 0x2000, scoped, tag = 'input window, operand 0']
    #allocation3 [shape = 's32[2]{0}', space=sflag, size = 0x8, scoped, tag = 'scoped memory for tpu_custom_call.1']
    #allocation4 [shape = 's32[2]{0}', space=sflag, size = 0x8, scoped, tag = 'scoped memory for tpu_custom_call.1']
    #allocation5 [shape = 'u8[8192]{0}', space=vmem, size = 0x2000, scoped, tag = 'input window, operand 1']
    #allocation6 [shape = 's32[2]{0}', space=sflag, size = 0x8, scoped, tag = 'scoped memory for tpu_custom_call.1']
    #allocation7 [shape = 'u8[8192]{0}', space=vmem, size = 0x2000, scoped, tag = 'output window, operand 0']
    %10 = vsyncpa [#allocation3], 0
    %s11 = scalar_lea.sflag [#allocation3], 1
    %12 = vsyncpa %s11, 0
    %13 = vsyncpa [#allocation6], 0
    %s14 = scalar_lea.sflag [#allocation6], 1
    %15 = vsyncpa %s14, 0
    %16 = vsyncpa [#allocation4], 0
    %s17 = scalar_lea.sflag [#allocation4], 1
    %18 = vsyncpa %s17, 0
    loop: start=0, step=1, limit=4
    $region2: #{tpu_custom_call.1} parent=1 // loop_pre_header
      _
    $region3: #{tpu_custom_call.1} parent=1 // loop_header
      %s20 = sphi 0, %s24
      %p21 = scmp.ge.s32.totalorder %s20, 4
      %s27 = sphi 0, %s46
      %s28 = sphi 0, %s42
      %s29 = sphi 0, %s38
      %s30 = sphi 0, %s27
      %s31 = sphi 0, %s28
      %s32 = sphi 0, %s29
      %s33 = sphi 0, %s30
      %s34 = sphi 0, %s31
      %s35 = sphi 0, %s32
      %s51 = sphi 0, %s53
      %s54 = sphi 0, %s51
      %s55 = sphi 0, %s54
      %s71 = sphi 0, %s55
      %s79 = sphi 0, %s81
      %s82 = sphi 0, %s79
      %s83 = sphi 0, %s82
      %s99 = sphi 0, %s83
      %s105 = sphi 0, %s107
      %s108 = sphi 0, %s105
      %s109 = sphi 0, %s108
      %s125 = sphi 0, %s109
      %s131 = sphi 0, %s133
      %s134 = sphi 0, %s131
      %s135 = sphi 0, %s134
      %s151 = sphi 0, %s135
      %s157 = sphi 0, %s159
      %s160 = sphi 0, %s157
      %s161 = sphi 0, %s160
      %s177 = sphi 0, %s161
      %s187 = sphi 0, %s189
      %s190 = sphi 0, %s187
      %s191 = sphi 0, %s190
      %s207 = sphi 0, %s191
    $region4: #{tpu_custom_call.1} parent=1 // loop_header_branch
      %23 = sbr.rel (%p21) target = $region8
    $region5: #{tpu_custom_call.1} parent=1 // loop_body
      %s25 = ssub.s32 %s20, 1
      %s26 = ssub.s32 %s20, 2
      %s36 = sadd.s32 1, %s29
      %p37 = scmp.ge.s32.totalorder %s36, 1
      %s38 = scalar_select %p37, 0, %s36
      %s39 = sadd.s32 1, %s28
      %s40 = scalar_select %p37, %s39, %s28
      %p41 = scmp.ge.s32.totalorder %s40, 1
      %s42 = scalar_select %p41, 0, %s40
      %s43 = sadd.s32 1, %s27
      %s44 = scalar_select %p41, %s43, %s27
      %p45 = scmp.ge.s32.totalorder %s44, 2
      %s46 = scalar_select %p45, 0, %s44
      %s47 = ssub.s32 %s27, %s46
      %s48 = ssub.s32 %s28, %s42
      %s49 = sor.u32 %s47, %s48
      %p50 = scmp.eq.s32.totalorder %s49, 0
      %s52 = sadd.s32 %s51, 1
      %s53 = scalar_select %p50, %s51, %s52
      %p56 = pneg %p50
      %p57 = scmp.eq.s32.totalorder %s20, 1
      %p58 = por %p56, %p57
      %p59 = scmp.ne.s32.totalorder %s51, %s54
      %p60 = scmp.eq.s32.totalorder %s20, 0
      %p61 = por %p59, %p60
      %p62 = scmp.ne.s32.totalorder %s51, %s54
      %p63 = scmp.eq.s32.totalorder %s25, 1
      %p64 = por %p62, %p63
      %p65 = scmp.ne.s32.totalorder %s54, %s55
      %p66 = scmp.eq.s32.totalorder %s25, 0
      %p67 = por %p65, %p66
      %p68 = scmp.ne.s32.totalorder %s54, %s55
      %p69 = scmp.eq.s32.totalorder %s26, 1
      %p70 = por %p68, %p69
      %p72 = scmp.ne.s32.totalorder %s55, %s71
      %p73 = scmp.eq.s32.totalorder %s26, 0
      %p74 = por %p72, %p73
      %s75 = ssub.s32 %s27, %s46
      %s76 = ssub.s32 %s28, %s42
      %s77 = sor.u32 %s75, %s76
      %p78 = scmp.eq.s32.totalorder %s77, 0
      %s80 = sadd.s32 %s79, 1
      %s81 = scalar_select %p78, %s79, %s80
      %p84 = pneg %p78
      %p85 = scmp.eq.s32.totalorder %s20, 1
      %p86 = por %p84, %p85
      %p87 = scmp.ne.s32.totalorder %s79, %s82
      %p88 = scmp.eq.s32.totalorder %s20, 0
      %p89 = por %p87, %p88
      %p90 = scmp.ne.s32.totalorder %s79, %s82
      %p91 = scmp.eq.s32.totalorder %s25, 1
      %p92 = por %p90, %p91
      %p93 = scmp.ne.s32.totalorder %s82, %s83
      %p94 = scmp.eq.s32.totalorder %s25, 0
      %p95 = por %p93, %p94
      %p96 = scmp.ne.s32.totalorder %s82, %s83
      %p97 = scmp.eq.s32.totalorder %s26, 1
      %p98 = por %p96, %p97
      %p100 = scmp.ne.s32.totalorder %s83, %s99
      %p101 = scmp.eq.s32.totalorder %s26, 0
      %p102 = por %p100, %p101
      %s103 = ssub.s32 %s29, %s38
      %p104 = scmp.eq.s32.totalorder %s103, 0
      %s106 = sadd.s32 %s105, 1
      %s107 = scalar_select %p104, %s105, %s106
      %p110 = pneg %p104
      %p111 = scmp.eq.s32.totalorder %s20, 1
      %p112 = por %p110, %p111
      %p113 = scmp.ne.s32.totalorder %s105, %s108
      %p114 = scmp.eq.s32.totalorder %s20, 0
      %p115 = por %p113, %p114
      %p116 = scmp.ne.s32.totalorder %s105, %s108
      %p117 = scmp.eq.s32.totalorder %s25, 1
      %p118 = por %p116, %p117
      %p119 = scmp.ne.s32.totalorder %s108, %s109
      %p120 = scmp.eq.s32.totalorder %s25, 0
      %p121 = por %p119, %p120
      %p122 = scmp.ne.s32.totalorder %s108, %s109
      %p123 = scmp.eq.s32.totalorder %s26, 1
      %p124 = por %p122, %p123
      %p126 = scmp.ne.s32.totalorder %s109, %s125
      %p127 = scmp.eq.s32.totalorder %s26, 0
      %p128 = por %p126, %p127
      %s129 = ssub.s32 %s29, %s38
      %p130 = scmp.eq.s32.totalorder %s129, 0
      %s132 = sadd.s32 %s131, 1
      %s133 = scalar_select %p130, %s131, %s132
      %p136 = pneg %p130
      %p137 = scmp.eq.s32.totalorder %s20, 1
      %p138 = por %p136, %p137
      %p139 = scmp.ne.s32.totalorder %s131, %s134
      %p140 = scmp.eq.s32.totalorder %s20, 0
      %p141 = por %p139, %p140
      %p142 = scmp.ne.s32.totalorder %s131, %s134
      %p143 = scmp.eq.s32.totalorder %s25, 1
      %p144 = por %p142, %p143
      %p145 = scmp.ne.s32.totalorder %s134, %s135
      %p146 = scmp.eq.s32.totalorder %s25, 0
      %p147 = por %p145, %p146
      %p148 = scmp.ne.s32.totalorder %s134, %s135
      %p149 = scmp.eq.s32.totalorder %s26, 1
      %p150 = por %p148, %p149
      %p152 = scmp.ne.s32.totalorder %s135, %s151
      %p153 = scmp.eq.s32.totalorder %s26, 0
      %p154 = por %p152, %p153
      %s155 = ssub.s32 %s29, %s38
      %p156 = scmp.eq.s32.totalorder %s155, 0
      %s158 = sadd.s32 %s157, 1
      %s159 = scalar_select %p156, %s157, %s158
      %p162 = pneg %p156
      %p163 = scmp.eq.s32.totalorder %s20, 1
      %p164 = por %p162, %p163
      %p165 = scmp.ne.s32.totalorder %s157, %s160
      %p166 = scmp.eq.s32.totalorder %s20, 0
      %p167 = por %p165, %p166
      %p168 = scmp.ne.s32.totalorder %s157, %s160
      %p169 = scmp.eq.s32.totalorder %s25, 1
      %p170 = por %p168, %p169
      %p171 = scmp.ne.s32.totalorder %s160, %s161
      %p172 = scmp.eq.s32.totalorder %s25, 0
      %p173 = por %p171, %p172
      %p174 = scmp.ne.s32.totalorder %s160, %s161
      %p175 = scmp.eq.s32.totalorder %s26, 1
      %p176 = por %p174, %p175
      %p178 = scmp.ne.s32.totalorder %s161, %s177
      %p179 = scmp.eq.s32.totalorder %s26, 0
      %p180 = por %p178, %p179
      %s181 = ssub.s32 %s27, %s46
      %s182 = ssub.s32 %s29, %s38
      %s183 = sor.u32 %s181, %s182
      %s184 = ssub.s32 %s28, %s42
      %s185 = sor.u32 %s183, %s184
      %p186 = scmp.eq.s32.totalorder %s185, 0
      %s188 = sadd.s32 %s187, 1
      %s189 = scalar_select %p186, %s187, %s188
      %p192 = pneg %p186
      %p193 = scmp.eq.s32.totalorder %s20, 1
      %p194 = por %p192, %p193
      %p195 = scmp.ne.s32.totalorder %s187, %s190
      %p196 = scmp.eq.s32.totalorder %s20, 0
      %p197 = por %p195, %p196
      %p198 = scmp.ne.s32.totalorder %s187, %s190
      %p199 = scmp.eq.s32.totalorder %s25, 1
      %p200 = por %p198, %p199
      %p201 = scmp.ne.s32.totalorder %s190, %s191
      %p202 = scmp.eq.s32.totalorder %s25, 0
      %p203 = por %p201, %p202
      %p204 = scmp.ne.s32.totalorder %s190, %s191
      %p205 = scmp.eq.s32.totalorder %s26, 1
      %p206 = por %p204, %p205
      %p208 = scmp.ne.s32.totalorder %s191, %s207
      %p209 = scmp.eq.s32.totalorder %s26, 0
      %p210 = por %p208, %p209
      %p211 = scmp.le.s32.totalorder 1, %s20
      %p212 = scmp.lt.s32.totalorder %s20, 3
      %p213 = pnand %p211, %p212
      %p214 = pneg %p213
      // Predicated region
      $region9: #{tpu_custom_call.1} parent=5 // pred_check
        _
      $region10: #{tpu_custom_call.1} parent=5 // pred_check_branch
        %216 = sbr.rel (%p213) target = $region12
      $region11: #{tpu_custom_call.1} parent=5 // pred_region
        %s217 = ssub.s32 %s20, 1
        // Predicated region
        $region13: #{tpu_custom_call.1} parent=11 // pred_check
          %p218 = pneg %p121
        $region14: #{tpu_custom_call.1} parent=11 // pred_check_branch
          %220 = sbr.rel (%p218) target = $region16
        $region15: #{tpu_custom_call.1} parent=11 // pred_region
          %p221 = scmp.lt.s32.totalorder %s32, 0
          %s222 = scalar_select %p221, %s32, 0
          %s223 = smul.addr %s222, 4
          %s224 = scalar_lea.vmem %s2, %s223
        $region16: #{tpu_custom_call.1} parent=11 // pred_fallthru
          _
        // Predicated region
        $region17: #{tpu_custom_call.1} parent=11 // pred_check
          %p225 = pneg %p147
        $region18: #{tpu_custom_call.1} parent=11 // pred_check_branch
          %227 = sbr.rel (%p225) target = $region20
        $region19: #{tpu_custom_call.1} parent=11 // pred_region
          %p228 = scmp.lt.s32.totalorder %s32, 0
          %s229 = scalar_select %p228, %s32, 0
          %s230 = smul.addr %s229, 4
          %s231 = scalar_lea.vmem %s3, %s230
        $region20: #{tpu_custom_call.1} parent=11 // pred_fallthru
          _
        // Predicated region
        $region21: #{tpu_custom_call.1} parent=11 // pred_check
          %p232 = pneg %p173
        $region22: #{tpu_custom_call.1} parent=11 // pred_check_branch
          %234 = sbr.rel (%p232) target = $region24
        $region23: #{tpu_custom_call.1} parent=11 // pred_region
          %p235 = scmp.lt.s32.totalorder %s32, 0
          %s236 = scalar_select %p235, %s32, 0
          %s237 = smul.addr %s236, 4
          %s238 = scalar_lea.vmem %s4, %s237
        $region24: #{tpu_custom_call.1} parent=11 // pred_fallthru
          _
      $region12: #{tpu_custom_call.1} parent=5 // pred_fallthru
        _
      %p239 = scmp.lt.s32.totalorder %s20, 2
      // Predicated region
      $region25: #{tpu_custom_call.1} parent=5 // pred_check
        %p240 = pneg %p239
      $region26: #{tpu_custom_call.1} parent=5 // pred_check_branch
        %242 = sbr.rel (%p240) target = $region28
      $region27: #{tpu_custom_call.1} parent=5 // pred_region
        // Predicated region
        $region29: #{tpu_custom_call.1} parent=27 // pred_check
          %p243 = pneg %p61
        $region30: #{tpu_custom_call.1} parent=27 // pred_check_branch
          %245 = sbr.rel (%p243) target = $region32
        $region31: #{tpu_custom_call.1} parent=27 // pred_region
          %s246 = sand.u32 %s51, 1
          %s247 = scalar_lea.sflag [#allocation3], %s246
          %s248 = sand.u32 %s51, 1
          %s249 = smul.addr %s248, 8
          %s250 = scalar_lea.vmem [#allocation2], %s249
          %s251 = smul.u32 2, %s28
          %s253 = ssub.s32 128, 128
          %254 = vsyncadd %s247, %s253
          %s255 = smul.addr %s27, 2
          %s256 = sadd.s32 %s251, %s255
          %s257 = smul.addr %s256, 64
          %s258 = scalar_lea.hbm %s0, %s257
          %s260 = sshll.u32 %s250, 4
          %s261 = int_to_ptr.vmem [resolvable:$true] %s260
          %263 = dma.hbm_to_vmem [thread:$0]  %s258, 128, %s261, %s247
        $region32: #{tpu_custom_call.1} parent=27 // pred_fallthru
          _
        // Predicated region
        $region33: #{tpu_custom_call.1} parent=27 // pred_check
          %p264 = pneg %p89
        $region34: #{tpu_custom_call.1} parent=27 // pred_check_branch
          %266 = sbr.rel (%p264) target = $region36
        $region35: #{tpu_custom_call.1} parent=27 // pred_region
          %s267 = sand.u32 %s79, 1
          %s268 = scalar_lea.sflag [#allocation6], %s267
          %s269 = sand.u32 %s79, 1
          %s270 = smul.addr %s269, 8
          %s271 = scalar_lea.vmem [#allocation5], %s270
          %s272 = smul.u32 2, %s28
          %s274 = ssub.s32 128, 128
          %275 = vsyncadd %s268, %s274
          %s276 = smul.addr %s27, 2
          %s277 = sadd.s32 %s272, %s276
          %s278 = smul.addr %s277, 64
          %s279 = scalar_lea.hbm %s1, %s278
          %s281 = sshll.u32 %s271, 4
          %s282 = int_to_ptr.vmem [resolvable:$true] %s281
          %284 = dma.hbm_to_vmem [thread:$0]  %s279, 128, %s282, %s268
        $region36: #{tpu_custom_call.1} parent=27 // pred_fallthru
          _
      $region28: #{tpu_custom_call.1} parent=5 // pred_fallthru
        _
      %p285 = scmp.le.s32.totalorder 1, %s20
      %p286 = scmp.lt.s32.totalorder %s20, 3
      %p287 = pnand %p285, %p286
      %p288 = pneg %p287
      // Predicated region
      $region37: #{tpu_custom_call.1} parent=5 // pred_check
        _
      $region38: #{tpu_custom_call.1} parent=5 // pred_check_branch
        %290 = sbr.rel (%p287) target = $region40
      $region39: #{tpu_custom_call.1} parent=5 // pred_region
        %s291 = ssub.s32 %s20, 1
        %s292 = sand.u32 %s54, 1
        %s293 = scalar_lea.sflag [#allocation3], %s292
        %s294 = sand.u32 %s54, 1
        %s295 = smul.addr %s294, 8
        %s296 = scalar_lea.vmem [#allocation2], %s295
        // Predicated region
        $region41: #{tpu_custom_call.1} parent=39 // pred_check
          %p297 = pneg %p67
        $region42: #{tpu_custom_call.1} parent=39 // pred_check_branch
          %299 = sbr.rel (%p297) target = $region44
        $region43: #{tpu_custom_call.1} parent=39 // pred_region
          %300 = dma.done %s293, 128
        $region44: #{tpu_custom_call.1} parent=39 // pred_fallthru
          _
        %s301 = sand.u32 %s82, 1
        %s302 = scalar_lea.sflag [#allocation6], %s301
        %s303 = sand.u32 %s82, 1
        %s304 = smul.addr %s303, 8
        %s305 = scalar_lea.vmem [#allocation5], %s304
        // Predicated region
        $region45: #{tpu_custom_call.1} parent=39 // pred_check
          %p306 = pneg %p95
        $region46: #{tpu_custom_call.1} parent=39 // pred_check_branch
          %308 = sbr.rel (%p306) target = $region48
        $region47: #{tpu_custom_call.1} parent=39 // pred_region
          %309 = dma.done %s302, 128
        $region48: #{tpu_custom_call.1} parent=39 // pred_fallthru
          _
        %s310 = sand.u32 %s54, 1
        %s311 = scalar_lea.sflag [#allocation3], %s310
        %s312 = sand.u32 %s54, 1
        %s313 = smul.addr %s312, 8
        %s314 = scalar_lea.vmem [#allocation2], %s313
        %p315 = pneg %p67
        %p316 = pneg %p64
        %s317 = sand.u32 %s82, 1
        %s318 = scalar_lea.sflag [#allocation6], %s317
        %s319 = sand.u32 %s82, 1
        %s320 = smul.addr %s319, 8
        %s321 = scalar_lea.vmem [#allocation5], %s320
        %p322 = pneg %p95
        %p323 = pneg %p92
        %p324 = scmp.lt.s32.totalorder %s32, 0
        %s325 = scalar_select %p324, %s32, 0
        %s326 = smul.addr %s325, 4
        %s327 = scalar_lea.vmem %s2, %s326
        %p328 = pneg %p121
        %p329 = pneg %p118
        %p330 = scmp.lt.s32.totalorder %s32, 0
        %s331 = scalar_select %p330, %s32, 0
        %s332 = smul.addr %s331, 4
        %s333 = scalar_lea.vmem %s3, %s332
        %p334 = pneg %p147
        %p335 = pneg %p144
        %p336 = scmp.lt.s32.totalorder %s32, 0
        %s337 = scalar_select %p336, %s32, 0
        %s338 = smul.addr %s337, 4
        %s339 = scalar_lea.vmem %s4, %s338
        %p340 = pneg %p173
        %p341 = pneg %p170
        %p342 = pneg %p203
        %p343 = pneg %p200
        %s344 = sand.u32 %s190, 1
        %s345 = scalar_lea.sflag [#allocation4], %s344
        %s346 = sand.u32 %s190, 1
        %s347 = smul.addr %s346, 8
        %s348 = scalar_lea.vmem [#allocation7], %s347
        %s349 = smul.u32 2, %s31
        %s350 = smul.u32 2, %s31
        %p351 = scmp.lt.s32.totalorder %s32, 0
        %s352 = scalar_select %p351, %s32, 0
        %s353 = smul.addr %s352, 4
        %s354 = scalar_lea.vmem %s2, %s353
        %p355 = scmp.lt.s32.totalorder %s32, 0
        %s356 = scalar_select %p355, %s32, 0
        %s357 = smul.addr %s356, 4
        %s358 = scalar_lea.vmem %s3, %s357
        %p359 = scmp.lt.s32.totalorder %s32, 0
        %s360 = scalar_select %p359, %s32, 0
        %s361 = smul.addr %s360, 4
        %s362 = scalar_lea.vmem %s4, %s361
        %s363 = smul.u32 2, %s31
        %v364 = vld [vmem:[%s296] sm:$0xff]
        %v365 = vmax.f32 %v364, 0.0
        %v366 = vld [vmem:[%s305] sm:$0xff]
        %v367 = vld [vmem:[%s354] sm:$0xf]
        %v368 = vld [vmem:[%s358] sm:$0xf]
        %v370 = vcombine.high %v366, %v366
        %vm371 = vcmask 31744
        %v373 = vsel %vm371, %v368, 0
        %vm375 = vcmask 1043456
        %v376 = vsel %vm375, %v366, 0
        %v378 = vsel %vm375, %v370, 0
        %v380 = vand.u32 %v378, 4294901760
        %381 = vmatprep.subr.mxu0 %v380
        %v382 = vand.u32 %v376, 4294901760
        %383 = vmatpush1.msra.mxu0 %v382
        %384 = vmatprep.subr.mxu0 0.0
        %385 = vmatpush1.msra.mxu0 0.0
        %386 = vmatprep.subr.mxu0 0.0
        %387 = vmatpush1.msra.mxu0 0.0
        %388 = vmatprep.subr.mxu0 0.0
        %389 = vmatpush1.msra.mxu0 0.0
        %390 = vmatprep.subr.mxu0 0.0
        %391 = vmatpush1.msra.mxu0 0.0
        %392 = vmatprep.subr.mxu0 0.0
        %393 = vmatpush1.msra.mxu0 0.0
        %394 = vmatprep.subr.mxu0 0.0
        %395 = vmatpush1.msra.mxu0 0.0
        %396 = vmatprep.subr.mxu0 0.0
        %397 = vmatpush1.msra.mxu0 0.0
        %398 = vmatprep.subr.mxu0 0.0
        %399 = vmatpush1.msra.mxu0 0.0
        %400 = vmatprep.subr.mxu0 0.0
        %401 = vmatpush1.msra.mxu0 0.0
        %402 = vmatprep.subr.mxu0 0.0
        %403 = vmatpush1.msra.mxu0 0.0
        %404 = vmatprep.subr.mxu0 0.0
        %405 = vmatpush1.msra.mxu0 0.0
        %406 = vmatprep.subr.mxu0 0.0
        %407 = vmatpush1.msra.mxu0 0.0
        %408 = vmatprep.subr.mxu0 0.0
        %409 = vmatpush1.msra.mxu0 0.0
        %410 = vmatprep.subr.mxu0 0.0
        %411 = vmatpush1.msra.mxu0 0.0
        %412 = vmatprep.subr.mxu0 0.0
        %413 = vmatpush1.msra.mxu0 0.0
        %414 = vmatprep.subr.mxu0 0.0
        %415 = vmatpush1.msra.mxu0 0.0
        %416 = vmatprep.subr.mxu0 0.0
        %417 = vmatpush1.msra.mxu0 0.0
        %418 = vmatprep.subr.mxu0 0.0
        %419 = vmatpush1.msra.mxu0 0.0
        %420 = vmatprep.subr.mxu0 0.0
        %421 = vmatpush1.msra.mxu0 0.0
        %422 = vmatprep.subr.mxu0 0.0
        %423 = vmatpush1.msra.mxu0 0.0
        %424 = vmatprep.subr.mxu0 0.0
        %425 = vmatpush1.msra.mxu0 0.0
        %426 = vmatprep.subr.mxu0 0.0
        %427 = vmatpush1.msra.mxu0 0.0
        %428 = vmatprep.subr.mxu0 0.0
        %429 = vmatpush1.msra.mxu0 0.0
        %430 = vmatprep.subr.mxu0 0.0
        %431 = vmatpush1.msra.mxu0 0.0
        %432 = vmatprep.subr.mxu0 0.0
        %433 = vmatpush1.msra.mxu0 0.0
        %434 = vmatprep.subr.mxu0 0.0
        %435 = vmatpush1.msra.mxu0 0.0
        %436 = vmatprep.subr.mxu0 0.0
        %437 = vmatpush1.msra.mxu0 0.0
        %438 = vmatprep.subr.mxu0 0.0
        %439 = vmatpush1.msra.mxu0 0.0
        %440 = vmatprep.subr.mxu0 0.0
        %441 = vmatpush1.msra.mxu0 0.0
        %442 = vmatprep.subr.mxu0 0.0
        %443 = vmatpush1.msra.mxu0 0.0
        %444 = vmatprep.subr.mxu0 0.0
        %445 = vmatpush1.msra.mxu0 0.0
        %446 = vmatprep.mubr.f32.mxu0 0.0
        %v447 = vand.u32 %v373, 4294901760
        %v448 = vsub.f32 %v373, %v447
        %v449 = vand.u32 %v448, 4294901760
        %v450 = vsub.f32 %v448, %v449
        %v451 = vand.u32 %v450, 4294901760
        %452 = vmatmul.mubr.f32.gmra.mrb[0].mxu0 %v451
        %v453 = vpop.f32.mrb[0].mxu0
        %v454 = vadd.f32 0.0, %v453
        %v455 = vpop.f32.mrb[0].mxu0
        %v456 = vadd.f32 0.0, %v455
        %457 = vdwg.mxu0
        %v458 = vand.u32 %v378, 4294901760
        %v459 = vsub.f32 %v378, %v458
        %v460 = vand.u32 %v459, 4294901760
        %v461 = vsub.f32 %v459, %v460
        %v462 = vand.u32 %v461, 4294901760
        %463 = vmatprep.subr.mxu0 %v462
        %v464 = vand.u32 %v376, 4294901760
        %v465 = vsub.f32 %v376, %v464
        %v466 = vand.u32 %v465, 4294901760
        %v467 = vsub.f32 %v465, %v466
        %v468 = vand.u32 %v467, 4294901760
        %469 = vmatpush1.msra.mxu0 %v468
        %470 = vmatprep.subr.mxu0 0.0
        %471 = vmatpush1.msra.mxu0 0.0
        %472 = vmatprep.subr.mxu0 0.0
        %473 = vmatpush1.msra.mxu0 0.0
        %474 = vmatprep.subr.mxu0 0.0
        %475 = vmatpush1.msra.mxu0 0.0
        %476 = vmatprep.subr.mxu0 0.0
        %477 = vmatpush1.msra.mxu0 0.0
        %478 = vmatprep.subr.mxu0 0.0
        %479 = vmatpush1.msra.mxu0 0.0
        %480 = vmatprep.subr.mxu0 0.0
        %481 = vmatpush1.msra.mxu0 0.0
        %482 = vmatprep.subr.mxu0 0.0
        %483 = vmatpush1.msra.mxu0 0.0
        %484 = vmatprep.subr.mxu0 0.0
        %485 = vmatpush1.msra.mxu0 0.0
        %486 = vmatprep.subr.mxu0 0.0
        %487 = vmatpush1.msra.mxu0 0.0
        %488 = vmatprep.subr.mxu0 0.0
        %489 = vmatpush1.msra.mxu0 0.0
        %490 = vmatprep.subr.mxu0 0.0
        %491 = vmatpush1.msra.mxu0 0.0
        %492 = vmatprep.subr.mxu0 0.0
        %493 = vmatpush1.msra.mxu0 0.0
        %494 = vmatprep.subr.mxu0 0.0
        %495 = vmatpush1.msra.mxu0 0.0
        %496 = vmatprep.subr.mxu0 0.0
        %497 = vmatpush1.msra.mxu0 0.0
        %498 = vmatprep.subr.mxu0 0.0
        %499 = vmatpush1.msra.mxu0 0.0
        %500 = vmatprep.subr.mxu0 0.0
        %501 = vmatpush1.msra.mxu0 0.0
        %502 = vmatprep.subr.mxu0 0.0
        %503 = vmatpush1.msra.mxu0 0.0
        %504 = vmatprep.subr.mxu0 0.0
        %505 = vmatpush1.msra.mxu0 0.0
        %506 = vmatprep.subr.mxu0 0.0
        %507 = vmatpush1.msra.mxu0 0.0
        %508 = vmatprep.subr.mxu0 0.0
        %509 = vmatpush1.msra.mxu0 0.0
        %510 = vmatprep.subr.mxu0 0.0
        %511 = vmatpush1.msra.mxu0 0.0
        %512 = vmatprep.subr.mxu0 0.0
        %513 = vmatpush1.msra.mxu0 0.0
        %514 = vmatprep.subr.mxu0 0.0
        %515 = vmatpush1.msra.mxu0 0.0
        %516 = vmatprep.subr.mxu0 0.0
        %517 = vmatpush1.msra.mxu0 0.0
        %518 = vmatprep.subr.mxu0 0.0
        %519 = vmatpush1.msra.mxu0 0.0
        %520 = vmatprep.subr.mxu0 0.0
        %521 = vmatpush1.msra.mxu0 0.0
        %522 = vmatprep.subr.mxu0 0.0
        %523 = vmatpush1.msra.mxu0 0.0
        %524 = vmatprep.subr.mxu0 0.0
        %525 = vmatpush1.msra.mxu0 0.0
        %526 = vmatprep.subr.mxu0 0.0
        %527 = vmatpush1.msra.mxu0 0.0
        %528 = vmatprep.subr.mxu0 0.0
        %529 = vmatpush1.msra.mxu0 0.0
        %530 = vmatprep.subr.mxu0 0.0
        %531 = vmatpush1.msra.mxu0 0.0
        %532 = vmatprep.mubr.f32.mxu0 0.0
        %v533 = vand.u32 %v373, 4294901760
        %534 = vmatmul.mubr.f32.gmra.mrb[0].mxu0 %v533
        %v535 = vpop.f32.mrb[0].mxu0
        %v536 = vadd.f32 %v454, %v535
        %v537 = vpop.f32.mrb[0].mxu0
        %v538 = vadd.f32 %v456, %v537
        %539 = vdwg.mxu0
        %v540 = vand.u32 %v378, 4294901760
        %v541 = vsub.f32 %v378, %v540
        %542 = vmatprep.subr.mxu0 %v541
        %v543 = vand.u32 %v376, 4294901760
        %v544 = vsub.f32 %v376, %v543
        %545 = vmatpush1.msra.mxu0 %v544
        %546 = vmatprep.subr.mxu0 0.0
        %547 = vmatpush1.msra.mxu0 0.0
        %548 = vmatprep.subr.mxu0 0.0
        %549 = vmatpush1.msra.mxu0 0.0
        %550 = vmatprep.subr.mxu0 0.0
        %551 = vmatpush1.msra.mxu0 0.0
        %552 = vmatprep.subr.mxu0 0.0
        %553 = vmatpush1.msra.mxu0 0.0
        %554 = vmatprep.subr.mxu0 0.0
        %555 = vmatpush1.msra.mxu0 0.0
        %556 = vmatprep.subr.mxu0 0.0
        %557 = vmatpush1.msra.mxu0 0.0
        %558 = vmatprep.subr.mxu0 0.0
        %559 = vmatpush1.msra.mxu0 0.0
        %560 = vmatprep.subr.mxu0 0.0
        %561 = vmatpush1.msra.mxu0 0.0
        %562 = vmatprep.subr.mxu0 0.0
        %563 = vmatpush1.msra.mxu0 0.0
        %564 = vmatprep.subr.mxu0 0.0
        %565 = vmatpush1.msra.mxu0 0.0
        %566 = vmatprep.subr.mxu0 0.0
        %567 = vmatpush1.msra.mxu0 0.0
        %568 = vmatprep.subr.mxu0 0.0
        %569 = vmatpush1.msra.mxu0 0.0
        %570 = vmatprep.subr.mxu0 0.0
        %571 = vmatpush1.msra.mxu0 0.0
        %572 = vmatprep.subr.mxu0 0.0
        %573 = vmatpush1.msra.mxu0 0.0
        %574 = vmatprep.subr.mxu0 0.0
        %575 = vmatpush1.msra.mxu0 0.0
        %576 = vmatprep.subr.mxu0 0.0
        %577 = vmatpush1.msra.mxu0 0.0
        %578 = vmatprep.subr.mxu0 0.0
        %579 = vmatpush1.msra.mxu0 0.0
        %580 = vmatprep.subr.mxu0 0.0
        %581 = vmatpush1.msra.mxu0 0.0
        %582 = vmatprep.subr.mxu0 0.0
        %583 = vmatpush1.msra.mxu0 0.0
        %584 = vmatprep.subr.mxu0 0.0
        %585 = vmatpush1.msra.mxu0 0.0
        %586 = vmatprep.subr.mxu0 0.0
        %587 = vmatpush1.msra.mxu0 0.0
        %588 = vmatprep.subr.mxu0 0.0
        %589 = vmatpush1.msra.mxu0 0.0
        %590 = vmatprep.subr.mxu0 0.0
        %591 = vmatpush1.msra.mxu0 0.0
        %592 = vmatprep.subr.mxu0 0.0
        %593 = vmatpush1.msra.mxu0 0.0
        %594 = vmatprep.subr.mxu0 0.0
        %595 = vmatpush1.msra.mxu0 0.0
        %596 = vmatprep.subr.mxu0 0.0
        %597 = vmatpush1.msra.mxu0 0.0
        %598 = vmatprep.subr.mxu0 0.0
        %599 = vmatpush1.msra.mxu0 0.0
        %600 = vmatprep.subr.mxu0 0.0
        %601 = vmatpush1.msra.mxu0 0.0
        %602 = vmatprep.subr.mxu0 0.0
        %603 = vmatpush1.msra.mxu0 0.0
        %604 = vmatprep.subr.mxu0 0.0
        %605 = vmatpush1.msra.mxu0 0.0
        %606 = vmatprep.subr.mxu0 0.0
        %607 = vmatpush1.msra.mxu0 0.0
        %608 = vmatprep.mubr.f32.mxu0 0.0
        %v609 = vand.u32 %v373, 4294901760
        %v610 = vsub.f32 %v373, %v609
        %611 = vmatmul.mubr.f32.gmra.mrb[0].mxu0 %v610
        %v612 = vpop.f32.mrb[0].mxu0
        %v613 = vadd.f32 %v536, %v612
        %v614 = vpop.f32.mrb[0].mxu0
        %v615 = vadd.f32 %v538, %v614
        %616 = vdwg.mxu0
        %v617 = vand.u32 %v378, 4294901760
        %618 = vmatprep.subr.mxu0 %v617
        %v619 = vand.u32 %v376, 4294901760
        %620 = vmatpush1.msra.mxu0 %v619
        %621 = vmatprep.subr.mxu0 0.0
        %622 = vmatpush1.msra.mxu0 0.0
        %623 = vmatprep.subr.mxu0 0.0
        %624 = vmatpush1.msra.mxu0 0.0
        %625 = vmatprep.subr.mxu0 0.0
        %626 = vmatpush1.msra.mxu0 0.0
        %627 = vmatprep.subr.mxu0 0.0
        %628 = vmatpush1.msra.mxu0 0.0
        %629 = vmatprep.subr.mxu0 0.0
        %630 = vmatpush1.msra.mxu0 0.0
        %631 = vmatprep.subr.mxu0 0.0
        %632 = vmatpush1.msra.mxu0 0.0
        %633 = vmatprep.subr.mxu0 0.0
        %634 = vmatpush1.msra.mxu0 0.0
        %635 = vmatprep.subr.mxu0 0.0
        %636 = vmatpush1.msra.mxu0 0.0
        %637 = vmatprep.subr.mxu0 0.0
        %638 = vmatpush1.msra.mxu0 0.0
        %639 = vmatprep.subr.mxu0 0.0
        %640 = vmatpush1.msra.mxu0 0.0
        %641 = vmatprep.subr.mxu0 0.0
        %642 = vmatpush1.msra.mxu0 0.0
        %643 = vmatprep.subr.mxu0 0.0
        %644 = vmatpush1.msra.mxu0 0.0
        %645 = vmatprep.subr.mxu0 0.0
        %646 = vmatpush1.msra.mxu0 0.0
        %647 = vmatprep.subr.mxu0 0.0
        %648 = vmatpush1.msra.mxu0 0.0
        %649 = vmatprep.subr.mxu0 0.0
        %650 = vmatpush1.msra.mxu0 0.0
        %651 = vmatprep.subr.mxu0 0.0
        %652 = vmatpush1.msra.mxu0 0.0
        %653 = vmatprep.subr.mxu0 0.0
        %654 = vmatpush1.msra.mxu0 0.0
        %655 = vmatprep.subr.mxu0 0.0
        %656 = vmatpush1.msra.mxu0 0.0
        %657 = vmatprep.subr.mxu0 0.0
        %658 = vmatpush1.msra.mxu0 0.0
        %659 = vmatprep.subr.mxu0 0.0
        %660 = vmatpush1.msra.mxu0 0.0
        %661 = vmatprep.subr.mxu0 0.0
        %662 = vmatpush1.msra.mxu0 0.0
        %663 = vmatprep.subr.mxu0 0.0
        %664 = vmatpush1.msra.mxu0 0.0
        %665 = vmatprep.subr.mxu0 0.0
        %666 = vmatpush1.msra.mxu0 0.0
        %667 = vmatprep.subr.mxu0 0.0
        %668 = vmatpush1.msra.mxu0 0.0
        %669 = vmatprep.subr.mxu0 0.0
        %670 = vmatpush1.msra.mxu0 0.0
        %671 = vmatprep.subr.mxu0 0.0
        %672 = vmatpush1.msra.mxu0 0.0
        %673 = vmatprep.subr.mxu0 0.0
        %674 = vmatpush1.msra.mxu0 0.0
        %675 = vmatprep.subr.mxu0 0.0
        %676 = vmatpush1.msra.mxu0 0.0
        %677 = vmatprep.subr.mxu0 0.0
        %678 = vmatpush1.msra.mxu0 0.0
        %679 = vmatprep.subr.mxu0 0.0
        %680 = vmatpush1.msra.mxu0 0.0
        %681 = vmatprep.subr.mxu0 0.0
        %682 = vmatpush1.msra.mxu0 0.0
        %683 = vmatprep.mubr.f32.mxu0 0.0
        %v684 = vand.u32 %v373, 4294901760
        %v685 = vsub.f32 %v373, %v684
        %v686 = vand.u32 %v685, 4294901760
        %687 = vmatmul.mubr.f32.gmra.mrb[0].mxu0 %v686
        %v688 = vpop.f32.mrb[0].mxu0
        %v689 = vadd.f32 %v613, %v688
        %v690 = vpop.f32.mrb[0].mxu0
        %v691 = vadd.f32 %v615, %v690
        %692 = vdwg.mxu0
        %v693 = vand.u32 %v378, 4294901760
        %v694 = vsub.f32 %v378, %v693
        %v695 = vand.u32 %v694, 4294901760
        %696 = vmatprep.subr.mxu0 %v695
        %v697 = vand.u32 %v376, 4294901760
        %v698 = vsub.f32 %v376, %v697
        %v699 = vand.u32 %v698, 4294901760
        %700 = vmatpush1.msra.mxu0 %v699
        %701 = vmatprep.subr.mxu0 0.0
        %702 = vmatpush1.msra.mxu0 0.0
        %703 = vmatprep.subr.mxu0 0.0
        %704 = vmatpush1.msra.mxu0 0.0
        %705 = vmatprep.subr.mxu0 0.0
        %706 = vmatpush1.msra.mxu0 0.0
        %707 = vmatprep.subr.mxu0 0.0
        %708 = vmatpush1.msra.mxu0 0.0
        %709 = vmatprep.subr.mxu0 0.0
        %710 = vmatpush1.msra.mxu0 0.0
        %711 = vmatprep.subr.mxu0 0.0
        %712 = vmatpush1.msra.mxu0 0.0
        %713 = vmatprep.subr.mxu0 0.0
        %714 = vmatpush1.msra.mxu0 0.0
        %715 = vmatprep.subr.mxu0 0.0
        %716 = vmatpush1.msra.mxu0 0.0
        %717 = vmatprep.subr.mxu0 0.0
        %718 = vmatpush1.msra.mxu0 0.0
        %719 = vmatprep.subr.mxu0 0.0
        %720 = vmatpush1.msra.mxu0 0.0
        %721 = vmatprep.subr.mxu0 0.0
        %722 = vmatpush1.msra.mxu0 0.0
        %723 = vmatprep.subr.mxu0 0.0
        %724 = vmatpush1.msra.mxu0 0.0
        %725 = vmatprep.subr.mxu0 0.0
        %726 = vmatpush1.msra.mxu0 0.0
        %727 = vmatprep.subr.mxu0 0.0
        %728 = vmatpush1.msra.mxu0 0.0
        %729 = vmatprep.subr.mxu0 0.0
        %730 = vmatpush1.msra.mxu0 0.0
        %731 = vmatprep.subr.mxu0 0.0
        %732 = vmatpush1.msra.mxu0 0.0
        %733 = vmatprep.subr.mxu0 0.0
        %734 = vmatpush1.msra.mxu0 0.0
        %735 = vmatprep.subr.mxu0 0.0
        %736 = vmatpush1.msra.mxu0 0.0
        %737 = vmatprep.subr.mxu0 0.0
        %738 = vmatpush1.msra.mxu0 0.0
        %739 = vmatprep.subr.mxu0 0.0
        %740 = vmatpush1.msra.mxu0 0.0
        %741 = vmatprep.subr.mxu0 0.0
        %742 = vmatpush1.msra.mxu0 0.0
        %743 = vmatprep.subr.mxu0 0.0
        %744 = vmatpush1.msra.mxu0 0.0
        %745 = vmatprep.subr.mxu0 0.0
        %746 = vmatpush1.msra.mxu0 0.0
        %747 = vmatprep.subr.mxu0 0.0
        %748 = vmatpush1.msra.mxu0 0.0
        %749 = vmatprep.subr.mxu0 0.0
        %750 = vmatpush1.msra.mxu0 0.0
        %751 = vmatprep.subr.mxu0 0.0
        %752 = vmatpush1.msra.mxu0 0.0
        %753 = vmatprep.subr.mxu0 0.0
        %754 = vmatpush1.msra.mxu0 0.0
        %755 = vmatprep.subr.mxu0 0.0
        %756 = vmatpush1.msra.mxu0 0.0
        %757 = vmatprep.subr.mxu0 0.0
        %758 = vmatpush1.msra.mxu0 0.0
        %759 = vmatprep.subr.mxu0 0.0
        %760 = vmatpush1.msra.mxu0 0.0
        %761 = vmatprep.subr.mxu0 0.0
        %762 = vmatpush1.msra.mxu0 0.0
        %763 = vmatprep.mubr.f32.mxu0 0.0
        %v764 = vand.u32 %v373, 4294901760
        %765 = vmatmul.mubr.f32.gmra.mrb[0].mxu0 %v764
        %v766 = vpop.f32.mrb[0].mxu0
        %v767 = vadd.f32 %v689, %v766
        %v768 = vpop.f32.mrb[0].mxu0
        %v769 = vadd.f32 %v691, %v768
        %770 = vdwg.mxu0
        %v771 = vand.u32 %v378, 4294901760
        %772 = vmatprep.subr.mxu0 %v771
        %v773 = vand.u32 %v376, 4294901760
        %774 = vmatpush1.msra.mxu0 %v773
        %775 = vmatprep.subr.mxu0 0.0
        %776 = vmatpush1.msra.mxu0 0.0
        %777 = vmatprep.subr.mxu0 0.0
        %778 = vmatpush1.msra.mxu0 0.0
        %779 = vmatprep.subr.mxu0 0.0
        %780 = vmatpush1.msra.mxu0 0.0
        %781 = vmatprep.subr.mxu0 0.0
        %782 = vmatpush1.msra.mxu0 0.0
        %783 = vmatprep.subr.mxu0 0.0
        %784 = vmatpush1.msra.mxu0 0.0
        %785 = vmatprep.subr.mxu0 0.0
        %786 = vmatpush1.msra.mxu0 0.0
        %787 = vmatprep.subr.mxu0 0.0
        %788 = vmatpush1.msra.mxu0 0.0
        %789 = vmatprep.subr.mxu0 0.0
        %790 = vmatpush1.msra.mxu0 0.0
        %791 = vmatprep.subr.mxu0 0.0
        %792 = vmatpush1.msra.mxu0 0.0
        %793 = vmatprep.subr.mxu0 0.0
        %794 = vmatpush1.msra.mxu0 0.0
        %795 = vmatprep.subr.mxu0 0.0
        %796 = vmatpush1.msra.mxu0 0.0
        %797 = vmatprep.subr.mxu0 0.0
        %798 = vmatpush1.msra.mxu0 0.0
        %799 = vmatprep.subr.mxu0 0.0
        %800 = vmatpush1.msra.mxu0 0.0
        %801 = vmatprep.subr.mxu0 0.0
        %802 = vmatpush1.msra.mxu0 0.0
        %803 = vmatprep.subr.mxu0 0.0
        %804 = vmatpush1.msra.mxu0 0.0
        %805 = vmatprep.subr.mxu0 0.0
        %806 = vmatpush1.msra.mxu0 0.0
        %807 = vmatprep.subr.mxu0 0.0
        %808 = vmatpush1.msra.mxu0 0.0
        %809 = vmatprep.subr.mxu0 0.0
        %810 = vmatpush1.msra.mxu0 0.0
        %811 = vmatprep.subr.mxu0 0.0
        %812 = vmatpush1.msra.mxu0 0.0
        %813 = vmatprep.subr.mxu0 0.0
        %814 = vmatpush1.msra.mxu0 0.0
        %815 = vmatprep.subr.mxu0 0.0
        %816 = vmatpush1.msra.mxu0 0.0
        %817 = vmatprep.subr.mxu0 0.0
        %818 = vmatpush1.msra.mxu0 0.0
        %819 = vmatprep.subr.mxu0 0.0
        %820 = vmatpush1.msra.mxu0 0.0
        %821 = vmatprep.subr.mxu0 0.0
        %822 = vmatpush1.msra.mxu0 0.0
        %823 = vmatprep.subr.mxu0 0.0
        %824 = vmatpush1.msra.mxu0 0.0
        %825 = vmatprep.subr.mxu0 0.0
        %826 = vmatpush1.msra.mxu0 0.0
        %827 = vmatprep.subr.mxu0 0.0
        %828 = vmatpush1.msra.mxu0 0.0
        %829 = vmatprep.subr.mxu0 0.0
        %830 = vmatpush1.msra.mxu0 0.0
        %831 = vmatprep.subr.mxu0 0.0
        %832 = vmatpush1.msra.mxu0 0.0
        %833 = vmatprep.subr.mxu0 0.0
        %834 = vmatpush1.msra.mxu0 0.0
        %835 = vmatprep.subr.mxu0 0.0
        %836 = vmatpush1.msra.mxu0 0.0
        %837 = vmatprep.mubr.f32.mxu0 0.0
        %v838 = vand.u32 %v373, 4294901760
        %839 = vmatmul.mubr.f32.gmra.mrb[0].mxu0 %v838
        %v840 = vpop.f32.mrb[0].mxu0
        %v841 = vadd.f32 %v767, %v840
        %v842 = vpop.f32.mrb[0].mxu0
        %v843 = vadd.f32 %v769, %v842
        %844 = vdwg.mxu0
        %v846 = vcombine.high %v365, %v365
        %v848 = vsel %vm371, %v367, 0
        %v850 = vsel %vm375, %v365, 0
        %v852 = vsel %vm375, %v846, 0
        %v854 = vand.u32 %v852, 4294901760
        %855 = vmatprep.subr.mxu0 %v854
        %v856 = vand.u32 %v850, 4294901760
        %857 = vmatpush1.msra.mxu0 %v856
        %858 = vmatprep.subr.mxu0 0.0
        %859 = vmatpush1.msra.mxu0 0.0
        %860 = vmatprep.subr.mxu0 0.0
        %861 = vmatpush1.msra.mxu0 0.0
        %862 = vmatprep.subr.mxu0 0.0
        %863 = vmatpush1.msra.mxu0 0.0
        %864 = vmatprep.subr.mxu0 0.0
        %865 = vmatpush1.msra.mxu0 0.0
        %866 = vmatprep.subr.mxu0 0.0
        %867 = vmatpush1.msra.mxu0 0.0
        %868 = vmatprep.subr.mxu0 0.0
        %869 = vmatpush1.msra.mxu0 0.0
        %870 = vmatprep.subr.mxu0 0.0
        %871 = vmatpush1.msra.mxu0 0.0
        %872 = vmatprep.subr.mxu0 0.0
        %873 = vmatpush1.msra.mxu0 0.0
        %874 = vmatprep.subr.mxu0 0.0
        %875 = vmatpush1.msra.mxu0 0.0
        %876 = vmatprep.subr.mxu0 0.0
        %877 = vmatpush1.msra.mxu0 0.0
        %878 = vmatprep.subr.mxu0 0.0
        %879 = vmatpush1.msra.mxu0 0.0
        %880 = vmatprep.subr.mxu0 0.0
        %881 = vmatpush1.msra.mxu0 0.0
        %882 = vmatprep.subr.mxu0 0.0
        %883 = vmatpush1.msra.mxu0 0.0
        %884 = vmatprep.subr.mxu0 0.0
        %885 = vmatpush1.msra.mxu0 0.0
        %886 = vmatprep.subr.mxu0 0.0
        %887 = vmatpush1.msra.mxu0 0.0
        %888 = vmatprep.subr.mxu0 0.0
        %889 = vmatpush1.msra.mxu0 0.0
        %890 = vmatprep.subr.mxu0 0.0
        %891 = vmatpush1.msra.mxu0 0.0
        %892 = vmatprep.subr.mxu0 0.0
        %893 = vmatpush1.msra.mxu0 0.0
        %894 = vmatprep.subr.mxu0 0.0
        %895 = vmatpush1.msra.mxu0 0.0
        %896 = vmatprep.subr.mxu0 0.0
        %897 = vmatpush1.msra.mxu0 0.0
        %898 = vmatprep.subr.mxu0 0.0
        %899 = vmatpush1.msra.mxu0 0.0
        %900 = vmatprep.subr.mxu0 0.0
        %901 = vmatpush1.msra.mxu0 0.0
        %902 = vmatprep.subr.mxu0 0.0
        %903 = vmatpush1.msra.mxu0 0.0
        %904 = vmatprep.subr.mxu0 0.0
        %905 = vmatpush1.msra.mxu0 0.0
        %906 = vmatprep.subr.mxu0 0.0
        %907 = vmatpush1.msra.mxu0 0.0
        %908 = vmatprep.subr.mxu0 0.0
        %909 = vmatpush1.msra.mxu0 0.0
        %910 = vmatprep.subr.mxu0 0.0
        %911 = vmatpush1.msra.mxu0 0.0
        %912 = vmatprep.subr.mxu0 0.0
        %913 = vmatpush1.msra.mxu0 0.0
        %914 = vmatprep.subr.mxu0 0.0
        %915 = vmatpush1.msra.mxu0 0.0
        %916 = vmatprep.subr.mxu0 0.0
        %917 = vmatpush1.msra.mxu0 0.0
        %918 = vmatprep.subr.mxu0 0.0
        %919 = vmatpush1.msra.mxu0 0.0
        %920 = vmatprep.mubr.f32.mxu0 0.0
        %v921 = vand.u32 %v848, 4294901760
        %v922 = vsub.f32 %v848, %v921
        %v923 = vand.u32 %v922, 4294901760
        %v924 = vsub.f32 %v922, %v923
        %v925 = vand.u32 %v924, 4294901760
        %926 = vmatmul.mubr.f32.gmra.mrb[0].mxu0 %v925
        %v927 = vpop.f32.mrb[0].mxu0
        %v928 = vadd.f32 %v841, %v927
        %v929 = vpop.f32.mrb[0].mxu0
        %v930 = vadd.f32 %v843, %v929
        %931 = vdwg.mxu0
        %v932 = vand.u32 %v852, 4294901760
        %v933 = vsub.f32 %v852, %v932
        %v934 = vand.u32 %v933, 4294901760
        %v935 = vsub.f32 %v933, %v934
        %v936 = vand.u32 %v935, 4294901760
        %937 = vmatprep.subr.mxu0 %v936
        %v938 = vand.u32 %v850, 4294901760
        %v939 = vsub.f32 %v850, %v938
        %v940 = vand.u32 %v939, 4294901760
        %v941 = vsub.f32 %v939, %v940
        %v942 = vand.u32 %v941, 4294901760
        %943 = vmatpush1.msra.mxu0 %v942
        %944 = vmatprep.subr.mxu0 0.0
        %945 = vmatpush1.msra.mxu0 0.0
        %946 = vmatprep.subr.mxu0 0.0
        %947 = vmatpush1.msra.mxu0 0.0
        %948 = vmatprep.subr.mxu0 0.0
        %949 = vmatpush1.msra.mxu0 0.0
        %950 = vmatprep.subr.mxu0 0.0
        %951 = vmatpush1.msra.mxu0 0.0
        %952 = vmatprep.subr.mxu0 0.0
        %953 = vmatpush1.msra.mxu0 0.0
        %954 = vmatprep.subr.mxu0 0.0
        %955 = vmatpush1.msra.mxu0 0.0
        %956 = vmatprep.subr.mxu0 0.0
        %957 = vmatpush1.msra.mxu0 0.0
        %958 = vmatprep.subr.mxu0 0.0
        %959 = vmatpush1.msra.mxu0 0.0
        %960 = vmatprep.subr.mxu0 0.0
        %961 = vmatpush1.msra.mxu0 0.0
        %962 = vmatprep.subr.mxu0 0.0
        %963 = vmatpush1.msra.mxu0 0.0
        %964 = vmatprep.subr.mxu0 0.0
        %965 = vmatpush1.msra.mxu0 0.0
        %966 = vmatprep.subr.mxu0 0.0
        %967 = vmatpush1.msra.mxu0 0.0
        %968 = vmatprep.subr.mxu0 0.0
        %969 = vmatpush1.msra.mxu0 0.0
        %970 = vmatprep.subr.mxu0 0.0
        %971 = vmatpush1.msra.mxu0 0.0
        %972 = vmatprep.subr.mxu0 0.0
        %973 = vmatpush1.msra.mxu0 0.0
        %974 = vmatprep.subr.mxu0 0.0
        %975 = vmatpush1.msra.mxu0 0.0
        %976 = vmatprep.subr.mxu0 0.0
        %977 = vmatpush1.msra.mxu0 0.0
        %978 = vmatprep.subr.mxu0 0.0
        %979 = vmatpush1.msra.mxu0 0.0
        %980 = vmatprep.subr.mxu0 0.0
        %981 = vmatpush1.msra.mxu0 0.0
        %982 = vmatprep.subr.mxu0 0.0
        %983 = vmatpush1.msra.mxu0 0.0
        %984 = vmatprep.subr.mxu0 0.0
        %985 = vmatpush1.msra.mxu0 0.0
        %986 = vmatprep.subr.mxu0 0.0
        %987 = vmatpush1.msra.mxu0 0.0
        %988 = vmatprep.subr.mxu0 0.0
        %989 = vmatpush1.msra.mxu0 0.0
        %990 = vmatprep.subr.mxu0 0.0
        %991 = vmatpush1.msra.mxu0 0.0
        %992 = vmatprep.subr.mxu0 0.0
        %993 = vmatpush1.msra.mxu0 0.0
        %994 = vmatprep.subr.mxu0 0.0
        %995 = vmatpush1.msra.mxu0 0.0
        %996 = vmatprep.subr.mxu0 0.0
        %997 = vmatpush1.msra.mxu0 0.0
        %998 = vmatprep.subr.mxu0 0.0
        %999 = vmatpush1.msra.mxu0 0.0
        %1000 = vmatprep.subr.mxu0 0.0
        %1001 = vmatpush1.msra.mxu0 0.0
        %1002 = vmatprep.subr.mxu0 0.0
        %1003 = vmatpush1.msra.mxu0 0.0
        %1004 = vmatprep.subr.mxu0 0.0
        %1005 = vmatpush1.msra.mxu0 0.0
        %1006 = vmatprep.mubr.f32.mxu0 0.0
        %v1007 = vand.u32 %v848, 4294901760
        %1008 = vmatmul.mubr.f32.gmra.mrb[0].mxu0 %v1007
        %v1009 = vpop.f32.mrb[0].mxu0
        %v1010 = vadd.f32 %v928, %v1009
        %v1011 = vpop.f32.mrb[0].mxu0
        %v1012 = vadd.f32 %v930, %v1011
        %1013 = vdwg.mxu0
        %v1014 = vand.u32 %v852, 4294901760
        %v1015 = vsub.f32 %v852, %v1014
        %1016 = vmatprep.subr.mxu0 %v1015
        %v1017 = vand.u32 %v850, 4294901760
        %v1018 = vsub.f32 %v850, %v1017
        %1019 = vmatpush1.msra.mxu0 %v1018
        %1020 = vmatprep.subr.mxu0 0.0
        %1021 = vmatpush1.msra.mxu0 0.0
        %1022 = vmatprep.subr.mxu0 0.0
        %1023 = vmatpush1.msra.mxu0 0.0
        %1024 = vmatprep.subr.mxu0 0.0
        %1025 = vmatpush1.msra.mxu0 0.0
        %1026 = vmatprep.subr.mxu0 0.0
        %1027 = vmatpush1.msra.mxu0 0.0
        %1028 = vmatprep.subr.mxu0 0.0
        %1029 = vmatpush1.msra.mxu0 0.0
        %1030 = vmatprep.subr.mxu0 0.0
        %1031 = vmatpush1.msra.mxu0 0.0
        %1032 = vmatprep.subr.mxu0 0.0
        %1033 = vmatpush1.msra.mxu0 0.0
        %1034 = vmatprep.subr.mxu0 0.0
        %1035 = vmatpush1.msra.mxu0 0.0
        %1036 = vmatprep.subr.mxu0 0.0
        %1037 = vmatpush1.msra.mxu0 0.0
        %1038 = vmatprep.subr.mxu0 0.0
        %1039 = vmatpush1.msra.mxu0 0.0
        %1040 = vmatprep.subr.mxu0 0.0
        %1041 = vmatpush1.msra.mxu0 0.0
        %1042 = vmatprep.subr.mxu0 0.0
        %1043 = vmatpush1.msra.mxu0 0.0
        %1044 = vmatprep.subr.mxu0 0.0
        %1045 = vmatpush1.msra.mxu0 0.0
        %1046 = vmatprep.subr.mxu0 0.0
        %1047 = vmatpush1.msra.mxu0 0.0
        %1048 = vmatprep.subr.mxu0 0.0
        %1049 = vmatpush1.msra.mxu0 0.0
        %1050 = vmatprep.subr.mxu0 0.0
        %1051 = vmatpush1.msra.mxu0 0.0
        %1052 = vmatprep.subr.mxu0 0.0
        %1053 = vmatpush1.msra.mxu0 0.0
        %1054 = vmatprep.subr.mxu0 0.0
        %1055 = vmatpush1.msra.mxu0 0.0
        %1056 = vmatprep.subr.mxu0 0.0
        %1057 = vmatpush1.msra.mxu0 0.0
        %1058 = vmatprep.subr.mxu0 0.0
        %1059 = vmatpush1.msra.mxu0 0.0
        %1060 = vmatprep.subr.mxu0 0.0
        %1061 = vmatpush1.msra.mxu0 0.0
        %1062 = vmatprep.subr.mxu0 0.0
        %1063 = vmatpush1.msra.mxu0 0.0
        %1064 = vmatprep.subr.mxu0 0.0
        %1065 = vmatpush1.msra.mxu0 0.0
        %1066 = vmatprep.subr.mxu0 0.0
        %1067 = vmatpush1.msra.mxu0 0.0
        %1068 = vmatprep.subr.mxu0 0.0
        %1069 = vmatpush1.msra.mxu0 0.0
        %1070 = vmatprep.subr.mxu0 0.0
        %1071 = vmatpush1.msra.mxu0 0.0
        %1072 = vmatprep.subr.mxu0 0.0
        %1073 = vmatpush1.msra.mxu0 0.0
        %1074 = vmatprep.subr.mxu0 0.0
        %1075 = vmatpush1.msra.mxu0 0.0
        %1076 = vmatprep.subr.mxu0 0.0
        %1077 = vmatpush1.msra.mxu0 0.0
        %1078 = vmatprep.subr.mxu0 0.0
        %1079 = vmatpush1.msra.mxu0 0.0
        %1080 = vmatprep.subr.mxu0 0.0
        %1081 = vmatpush1.msra.mxu0 0.0
        %1082 = vmatprep.mubr.f32.mxu0 0.0
        %v1083 = vand.u32 %v848, 4294901760
        %v1084 = vsub.f32 %v848, %v1083
        %1085 = vmatmul.mubr.f32.gmra.mrb[0].mxu0 %v1084
        %v1086 = vpop.f32.mrb[0].mxu0
        %v1087 = vadd.f32 %v1010, %v1086
        %v1088 = vpop.f32.mrb[0].mxu0
        %v1089 = vadd.f32 %v1012, %v1088
        %1090 = vdwg.mxu0
        %v1091 = vand.u32 %v852, 4294901760
        %1092 = vmatprep.subr.mxu0 %v1091
        %v1093 = vand.u32 %v850, 4294901760
        %1094 = vmatpush1.msra.mxu0 %v1093
        %1095 = vmatprep.subr.mxu0 0.0
        %1096 = vmatpush1.msra.mxu0 0.0
        %1097 = vmatprep.subr.mxu0 0.0
        %1098 = vmatpush1.msra.mxu0 0.0
        %1099 = vmatprep.subr.mxu0 0.0
        %1100 = vmatpush1.msra.mxu0 0.0
        %1101 = vmatprep.subr.mxu0 0.0
        %1102 = vmatpush1.msra.mxu0 0.0
        %1103 = vmatprep.subr.mxu0 0.0
        %1104 = vmatpush1.msra.mxu0 0.0
        %1105 = vmatprep.subr.mxu0 0.0
        %1106 = vmatpush1.msra.mxu0 0.0
        %1107 = vmatprep.subr.mxu0 0.0
        %1108 = vmatpush1.msra.mxu0 0.0
        %1109 = vmatprep.subr.mxu0 0.0
        %1110 = vmatpush1.msra.mxu0 0.0
        %1111 = vmatprep.subr.mxu0 0.0
        %1112 = vmatpush1.msra.mxu0 0.0
        %1113 = vmatprep.subr.mxu0 0.0
        %1114 = vmatpush1.msra.mxu0 0.0
        %1115 = vmatprep.subr.mxu0 0.0
        %1116 = vmatpush1.msra.mxu0 0.0
        %1117 = vmatprep.subr.mxu0 0.0
        %1118 = vmatpush1.msra.mxu0 0.0
        %1119 = vmatprep.subr.mxu0 0.0
        %1120 = vmatpush1.msra.mxu0 0.0
        %1121 = vmatprep.subr.mxu0 0.0
        %1122 = vmatpush1.msra.mxu0 0.0
        %1123 = vmatprep.subr.mxu0 0.0
        %1124 = vmatpush1.msra.mxu0 0.0
        %1125 = vmatprep.subr.mxu0 0.0
        %1126 = vmatpush1.msra.mxu0 0.0
        %1127 = vmatprep.subr.mxu0 0.0
        %1128 = vmatpush1.msra.mxu0 0.0
        %1129 = vmatprep.subr.mxu0 0.0
        %1130 = vmatpush1.msra.mxu0 0.0
        %1131 = vmatprep.subr.mxu0 0.0
        %1132 = vmatpush1.msra.mxu0 0.0
        %1133 = vmatprep.subr.mxu0 0.0
        %1134 = vmatpush1.msra.mxu0 0.0
        %1135 = vmatprep.subr.mxu0 0.0
        %1136 = vmatpush1.msra.mxu0 0.0
        %1137 = vmatprep.subr.mxu0 0.0
        %1138 = vmatpush1.msra.mxu0 0.0
        %1139 = vmatprep.subr.mxu0 0.0
        %1140 = vmatpush1.msra.mxu0 0.0
        %1141 = vmatprep.subr.mxu0 0.0
        %1142 = vmatpush1.msra.mxu0 0.0
        %1143 = vmatprep.subr.mxu0 0.0
        %1144 = vmatpush1.msra.mxu0 0.0
        %1145 = vmatprep.subr.mxu0 0.0
        %1146 = vmatpush1.msra.mxu0 0.0
        %1147 = vmatprep.subr.mxu0 0.0
        %1148 = vmatpush1.msra.mxu0 0.0
        %1149 = vmatprep.subr.mxu0 0.0
        %1150 = vmatpush1.msra.mxu0 0.0
        %1151 = vmatprep.subr.mxu0 0.0
        %1152 = vmatpush1.msra.mxu0 0.0
        %1153 = vmatprep.subr.mxu0 0.0
        %1154 = vmatpush1.msra.mxu0 0.0
        %1155 = vmatprep.subr.mxu0 0.0
        %1156 = vmatpush1.msra.mxu0 0.0
        %1157 = vmatprep.mubr.f32.mxu0 0.0
        %v1158 = vand.u32 %v848, 4294901760
        %v1159 = vsub.f32 %v848, %v1158
        %v1160 = vand.u32 %v1159, 4294901760
        %1161 = vmatmul.mubr.f32.gmra.mrb[0].mxu0 %v1160
        %v1162 = vpop.f32.mrb[0].mxu0
        %v1163 = vadd.f32 %v1087, %v1162
        %v1164 = vpop.f32.mrb[0].mxu0
        %v1165 = vadd.f32 %v1089, %v1164
        %1166 = vdwg.mxu0
        %v1167 = vand.u32 %v852, 4294901760
        %v1168 = vsub.f32 %v852, %v1167
        %v1169 = vand.u32 %v1168, 4294901760
        %1170 = vmatprep.subr.mxu0 %v1169
        %v1171 = vand.u32 %v850, 4294901760
        %v1172 = vsub.f32 %v850, %v1171
        %v1173 = vand.u32 %v1172, 4294901760
        %1174 = vmatpush1.msra.mxu0 %v1173
        %1175 = vmatprep.subr.mxu0 0.0
        %1176 = vmatpush1.msra.mxu0 0.0
        %1177 = vmatprep.subr.mxu0 0.0
        %1178 = vmatpush1.msra.mxu0 0.0
        %1179 = vmatprep.subr.mxu0 0.0
        %1180 = vmatpush1.msra.mxu0 0.0
        %1181 = vmatprep.subr.mxu0 0.0
        %1182 = vmatpush1.msra.mxu0 0.0
        %1183 = vmatprep.subr.mxu0 0.0
        %1184 = vmatpush1.msra.mxu0 0.0
        %1185 = vmatprep.subr.mxu0 0.0
        %1186 = vmatpush1.msra.mxu0 0.0
        %1187 = vmatprep.subr.mxu0 0.0
        %1188 = vmatpush1.msra.mxu0 0.0
        %1189 = vmatprep.subr.mxu0 0.0
        %1190 = vmatpush1.msra.mxu0 0.0
        %1191 = vmatprep.subr.mxu0 0.0
        %1192 = vmatpush1.msra.mxu0 0.0
        %1193 = vmatprep.subr.mxu0 0.0
        %1194 = vmatpush1.msra.mxu0 0.0
        %1195 = vmatprep.subr.mxu0 0.0
        %1196 = vmatpush1.msra.mxu0 0.0
        %1197 = vmatprep.subr.mxu0 0.0
        %1198 = vmatpush1.msra.mxu0 0.0
        %1199 = vmatprep.subr.mxu0 0.0
        %1200 = vmatpush1.msra.mxu0 0.0
        %1201 = vmatprep.subr.mxu0 0.0
        %1202 = vmatpush1.msra.mxu0 0.0
        %1203 = vmatprep.subr.mxu0 0.0
        %1204 = vmatpush1.msra.mxu0 0.0
        %1205 = vmatprep.subr.mxu0 0.0
        %1206 = vmatpush1.msra.mxu0 0.0
        %1207 = vmatprep.subr.mxu0 0.0
        %1208 = vmatpush1.msra.mxu0 0.0
        %1209 = vmatprep.subr.mxu0 0.0
        %1210 = vmatpush1.msra.mxu0 0.0
        %1211 = vmatprep.subr.mxu0 0.0
        %1212 = vmatpush1.msra.mxu0 0.0
        %1213 = vmatprep.subr.mxu0 0.0
        %1214 = vmatpush1.msra.mxu0 0.0
        %1215 = vmatprep.subr.mxu0 0.0
        %1216 = vmatpush1.msra.mxu0 0.0
        %1217 = vmatprep.subr.mxu0 0.0
        %1218 = vmatpush1.msra.mxu0 0.0
        %1219 = vmatprep.subr.mxu0 0.0
        %1220 = vmatpush1.msra.mxu0 0.0
        %1221 = vmatprep.subr.mxu0 0.0
        %1222 = vmatpush1.msra.mxu0 0.0
        %1223 = vmatprep.subr.mxu0 0.0
        %1224 = vmatpush1.msra.mxu0 0.0
        %1225 = vmatprep.subr.mxu0 0.0
        %1226 = vmatpush1.msra.mxu0 0.0
        %1227 = vmatprep.subr.mxu0 0.0
        %1228 = vmatpush1.msra.mxu0 0.0
        %1229 = vmatprep.subr.mxu0 0.0
        %1230 = vmatpush1.msra.mxu0 0.0
        %1231 = vmatprep.subr.mxu0 0.0
        %1232 = vmatpush1.msra.mxu0 0.0
        %1233 = vmatprep.subr.mxu0 0.0
        %1234 = vmatpush1.msra.mxu0 0.0
        %1235 = vmatprep.subr.mxu0 0.0
        %1236 = vmatpush1.msra.mxu0 0.0
        %1237 = vmatprep.mubr.f32.mxu0 0.0
        %v1238 = vand.u32 %v848, 4294901760
        %1239 = vmatmul.mubr.f32.gmra.mrb[0].mxu0 %v1238
        %v1240 = vpop.f32.mrb[0].mxu0
        %v1241 = vadd.f32 %v1163, %v1240
        %v1242 = vpop.f32.mrb[0].mxu0
        %v1243 = vadd.f32 %v1165, %v1242
        %1244 = vdwg.mxu0
        %v1245 = vand.u32 %v852, 4294901760
        %1246 = vmatprep.subr.mxu0 %v1245
        %v1247 = vand.u32 %v850, 4294901760
        %1248 = vmatpush1.msra.mxu0 %v1247
        %1249 = vmatprep.subr.mxu0 0.0
        %1250 = vmatpush1.msra.mxu0 0.0
        %1251 = vmatprep.subr.mxu0 0.0
        %1252 = vmatpush1.msra.mxu0 0.0
        %1253 = vmatprep.subr.mxu0 0.0
        %1254 = vmatpush1.msra.mxu0 0.0
        %1255 = vmatprep.subr.mxu0 0.0
        %1256 = vmatpush1.msra.mxu0 0.0
        %1257 = vmatprep.subr.mxu0 0.0
        %1258 = vmatpush1.msra.mxu0 0.0
        %1259 = vmatprep.subr.mxu0 0.0
        %1260 = vmatpush1.msra.mxu0 0.0
        %1261 = vmatprep.subr.mxu0 0.0
        %1262 = vmatpush1.msra.mxu0 0.0
        %1263 = vmatprep.subr.mxu0 0.0
        %1264 = vmatpush1.msra.mxu0 0.0
        %1265 = vmatprep.subr.mxu0 0.0
        %1266 = vmatpush1.msra.mxu0 0.0
        %1267 = vmatprep.subr.mxu0 0.0
        %1268 = vmatpush1.msra.mxu0 0.0
        %1269 = vmatprep.subr.mxu0 0.0
        %1270 = vmatpush1.msra.mxu0 0.0
        %1271 = vmatprep.subr.mxu0 0.0
        %1272 = vmatpush1.msra.mxu0 0.0
        %1273 = vmatprep.subr.mxu0 0.0
        %1274 = vmatpush1.msra.mxu0 0.0
        %1275 = vmatprep.subr.mxu0 0.0
        %1276 = vmatpush1.msra.mxu0 0.0
        %1277 = vmatprep.subr.mxu0 0.0
        %1278 = vmatpush1.msra.mxu0 0.0
        %1279 = vmatprep.subr.mxu0 0.0
        %1280 = vmatpush1.msra.mxu0 0.0
        %1281 = vmatprep.subr.mxu0 0.0
        %1282 = vmatpush1.msra.mxu0 0.0
        %1283 = vmatprep.subr.mxu0 0.0
        %1284 = vmatpush1.msra.mxu0 0.0
        %1285 = vmatprep.subr.mxu0 0.0
        %1286 = vmatpush1.msra.mxu0 0.0
        %1287 = vmatprep.subr.mxu0 0.0
        %1288 = vmatpush1.msra.mxu0 0.0
        %1289 = vmatprep.subr.mxu0 0.0
        %1290 = vmatpush1.msra.mxu0 0.0
        %1291 = vmatprep.subr.mxu0 0.0
        %1292 = vmatpush1.msra.mxu0 0.0
        %1293 = vmatprep.subr.mxu0 0.0
        %1294 = vmatpush1.msra.mxu0 0.0
        %1295 = vmatprep.subr.mxu0 0.0
        %1296 = vmatpush1.msra.mxu0 0.0
        %1297 = vmatprep.subr.mxu0 0.0
        %1298 = vmatpush1.msra.mxu0 0.0
        %1299 = vmatprep.subr.mxu0 0.0
        %1300 = vmatpush1.msra.mxu0 0.0
        %1301 = vmatprep.subr.mxu0 0.0
        %1302 = vmatpush1.msra.mxu0 0.0
        %1303 = vmatprep.subr.mxu0 0.0
        %1304 = vmatpush1.msra.mxu0 0.0
        %1305 = vmatprep.subr.mxu0 0.0
        %1306 = vmatpush1.msra.mxu0 0.0
        %1307 = vmatprep.subr.mxu0 0.0
        %1308 = vmatpush1.msra.mxu0 0.0
        %1309 = vmatprep.subr.mxu0 0.0
        %1310 = vmatpush1.msra.mxu0 0.0
        %1311 = vmatprep.mubr.f32.mxu0 0.0
        %v1312 = vand.u32 %v848, 4294901760
        %1313 = vmatmul.mubr.f32.gmra.mrb[0].mxu0 %v1312
        %v1314 = vpop.f32.mrb[0].mxu0
        %v1315 = vadd.f32 %v1241, %v1314
        %v1316 = vpop.f32.mrb[0].mxu0
        %v1317 = vadd.f32 %v1243, %v1316
        %1318 = vdwg.mxu0
        %v1319 = vld [vmem:[%s362] sm:$0xf]
        %1321 = vset.pattern.permute.xlu0 0
        %1322 = vperm.xlu0 %1321, %v1319
        %v1323 = vpop.permute.xlu0 %1322
        %v1325 = vadd.f32 %v1315, %v1323
        %v1326 = vadd.f32 %v1317, %v1323
        %v1329 = vcombine.low %v1325, %v1326
        %1331 = vst [vmem:[%s348] sm:$0xff] %v1329
        %s1332 = sand.u32 %s190, 1
        %s1333 = scalar_lea.sflag [#allocation4], %s1332
        %s1334 = sand.u32 %s190, 1
        %s1335 = smul.addr %s1334, 8
        %s1336 = scalar_lea.vmem [#allocation7], %s1335
        // Predicated region
        $region49: #{tpu_custom_call.1} parent=39 // pred_check
          %p1337 = pneg %p200
        $region50: #{tpu_custom_call.1} parent=39 // pred_check_branch
          %1339 = sbr.rel (%p1337) target = $region52
        $region51: #{tpu_custom_call.1} parent=39 // pred_region
          %s1340 = smul.u32 2, %s31
          %s1342 = ssub.s32 128, 128
          %1343 = vsyncadd %s1333, %s1342
          %s1344 = smul.addr %s32, 2
          %s1345 = sadd.s32 %s1340, %s1344
          %s1346 = smul.addr %s30, 2
          %s1347 = sadd.s32 %s1345, %s1346
          %s1348 = smul.addr %s1347, 64
          %s1349 = scalar_lea.hbm %s5, %s1348
          %s1351 = sshll.u32 %s1336, 4
          %s1352 = int_to_ptr.vmem [resolvable:$true] %s1351
          %1354 = dma.vmem_to_hbm [thread:$0]  %s1352, 128, %s1349, %s1333
        $region52: #{tpu_custom_call.1} parent=39 // pred_fallthru
          _
      $region40: #{tpu_custom_call.1} parent=5 // pred_fallthru
        _
      %p1355 = scmp.le.s32.totalorder 2, %s20
      // Predicated region
      $region53: #{tpu_custom_call.1} parent=5 // pred_check
        %p1356 = pneg %p1355
      $region54: #{tpu_custom_call.1} parent=5 // pred_check_branch
        %1358 = sbr.rel (%p1356) target = $region56
      $region55: #{tpu_custom_call.1} parent=5 // pred_region
        %s1359 = ssub.s32 %s20, 2
        // Predicated region
        $region57: #{tpu_custom_call.1} parent=55 // pred_check
          %p1360 = pneg %p206
        $region58: #{tpu_custom_call.1} parent=55 // pred_check_branch
          %1362 = sbr.rel (%p1360) target = $region60
        $region59: #{tpu_custom_call.1} parent=55 // pred_region
          %s1363 = sand.u32 %s191, 1
          %s1364 = scalar_lea.sflag [#allocation4], %s1363
          %s1365 = sand.u32 %s191, 1
          %s1366 = smul.addr %s1365, 8
          %s1367 = scalar_lea.vmem [#allocation7], %s1366
          %1368 = dma.done %s1364, 128
        $region60: #{tpu_custom_call.1} parent=55 // pred_fallthru
          _
      $region56: #{tpu_custom_call.1} parent=5 // pred_fallthru
        _
    $region6: #{tpu_custom_call.1} parent=1 // loop_footer
      %s24 = sadd.s32 1, %s20
    $region7: #{tpu_custom_call.1} parent=1 // loop_footer_branch
      %19 = sbr.rel target = $region3
    $region8: #{tpu_custom_call.1} parent=1 // loop_exit
      _
    %1369 = vsyncpa [#allocation3], 1
    %s1370 = scalar_lea.sflag [#allocation3], 1
    %1371 = vsyncpa %s1370, 1
    %1372 = vsyncpa [#allocation6], 1
    %s1373 = scalar_lea.sflag [#allocation6], 1
    %1374 = vsyncpa %s1373, 1
    %1375 = vsyncpa [#allocation4], 1
    %s1376 = scalar_lea.sflag [#allocation4], 1
    %1377 = vsyncpa %s1376, 1

</llo_original>
